<compile_context>
chip_gen: v6e
topology: v6e:2x2x1
jax: 0.10.0
libtpu: 0.0.40
codegen_flags: <defaults>
</compile_context>

<pallas_src>
import jax
import jax.numpy as jnp
from jax.experimental import pallas as pl
from jax.experimental.pallas import tpu as pltpu


def _round_up(a, m):
    return (a + m - 1) // m * m


def _pick_chunk(tile_i, cap):
    """Largest divisor of tile_i that is <= cap (preferring multiples of 8)."""
    cap = max(1, min(tile_i, cap))
    fallback = None
    for cand in range(cap, 0, -1):
        if tile_i % cand == 0:
            if cand % 8 == 0:
                return cand
            if fallback is None:
                fallback = cand
    return fallback if fallback is not None else tile_i


def _make_kernel(i_chunk, n_chunks, h_sub, seq_len):
    def kernel(x_t_ref, x_m_ref, rp_ref, bias_ref, o_ref, w_ref):
        # x_t_ref : (1, h_sub, S)       x^T  -- H on sublanes, j on lanes (scores phase)
        # x_m_ref : (1, S, h_out)       x    -- MXU RHS, lane-dense H
        # rp_ref  : (tile_i, h_sub, S)  rp re-laid as (i, H, j)
        # bias_ref: (1, 1, S)           additive mask bias (0 / -inf), f32
        # o_ref   : (1, tile_i, h_out)
        # w_ref   : (tile_i, S) f32 scratch -- softmax weights for this i-tile
        xf_t = x_t_ref[0].astype(jnp.float32)                       # (h_sub, S)
        # Hoisted out of the loop: JAX does not CSE broadcast_in_dim.
        xf_b = jnp.broadcast_to(xf_t, (i_chunk, h_sub, seq_len))    # (i_chunk, h_sub, S)
        bias_b = jnp.broadcast_to(bias_ref[0], (i_chunk, seq_len))  # (i_chunk, S)

        def chunk_body(c, carry):
            r0 = pl.multiple_of(c * i_chunk, i_chunk)
            rp_c = rp_ref[pl.ds(r0, i_chunk)]                       # (i_chunk, h_sub, S)
            # scores[i, j] = sum_h rp[i, h, j] * x[h, j]
            # -> VALU multiplies + sublane-axis reduction (no cross-lane XLU reduce).
            scores = jnp.sum(rp_c.astype(jnp.float32) * xf_b, axis=-2)   # (i_chunk, S)
            scores = scores + bias_b                                # masked j -> -inf
            smax = jnp.max(scores, axis=-1, keepdims=True)
            e = jnp.exp(scores - smax)
            denom = jnp.sum(e, axis=-1, keepdims=True)
            # EUP reciprocal (approx) instead of a VALU divide.
            w_ref[pl.ds(r0, i_chunk), :] = e * pl.reciprocal(denom, approx=True)
            return carry

        jax.lax.fori_loop(0, n_chunks, chunk_body, None, unroll=n_chunks <= 4)

        # One full-M MXU matmul + one lane-dense store for the whole i-tile.
        x_m = x_m_ref[0]                                            # (S, h_out)
        w = w_ref[...].astype(x_m.dtype)                            # (tile_i, S)
        o_ref[0] = jnp.dot(w, x_m,
                           preferred_element_type=jnp.float32).astype(o_ref.dtype)

    return kernel


def relative_position_encoding(x, relative_positions, mask=None, *,
                               rp_stream_dtype=None, tile_i=None):
    """x: (B, S, H); relative_positions: (max_seq, max_seq, H); mask: (B, S) or None.

    For bandwidth-bound v5e/v6e pass rp_stream_dtype=jnp.bfloat16 (halves the
    dominant rp HBM stream; in-kernel math stays f32).
    """
    B, S, H = x.shape

    rp = relative_positions[:S, :S, :]                    # glue: slicing in plain JAX
    if rp_stream_dtype is not None:
        rp = rp.astype(rp_stream_dtype)
    rp_t = jnp.transpose(rp, (0, 2, 1))                   # (S_i, H, S_j): H on sublanes

    rp_itemsize = jnp.dtype(rp_t.dtype).itemsize
    sub = max(8, 32 // rp_itemsize)                       # sublane packing of rp dtype
    h_sub = _round_up(H, sub)                             # H padded only to a sublane multiple
    h_out = _round_up(H, 128)                             # lane-dense output / MXU-RHS width

    x_t = jnp.transpose(x, (0, 2, 1))                     # (B, H, S)
    if h_sub != H:
        x_t = jnp.pad(x_t, ((0, 0), (0, h_sub - H), (0, 0)))
        rp_t = jnp.pad(rp_t, ((0, 0), (0, h_sub - H), (0, 0)))
    x_m = jnp.pad(x, ((0, 0), (0, 0), (0, h_out - H))) if h_out != H else x

    # Pre-fold the mask into an additive bias once (0 keep / -inf drop).
    if mask is None:
        bias = jnp.zeros((B, 1, S), dtype=jnp.float32)
    else:
        bias = jnp.where(mask.reshape(B, 1, S) == 0, -jnp.inf, 0.0).astype(jnp.float32)

    # ---- VMEM budgets derived from the chip (v7x 64 MiB, v5e/v6e 128 MiB) ----
    try:
        vmem_phys = int(pltpu.get_tpu_info().vmem_capacity_bytes)
    except Exception:
        vmem_phys = 64 * 1024 * 1024                      # conservative (v7x) fallback
    vmem_limit = int(vmem_phys * 0.75)                    # leave headroom for x/out/bias/scratch
    rp_budget = int(vmem_phys * 0.30)                     # rp double-buffer budget

    # ---- i-tile: biggest rp slab whose double-buffer fits the budget ----
    if tile_i is None:
        t = rp_budget // max(1, 2 * h_sub * S * rp_itemsize)
        t = max(8, min(128, t))
        if t >= S:
            # Keep >= 2 i-tiles when S allows so a v7x megacore split lands on i,
            # not on the inner batch axis (which would double per-core rp traffic).
            t = _round_up((S + 1) // 2, 8) if S >= 16 else S
        else:
            t = max(8, (t // 8) * 8)
        tile_i = t
    tile_i = max(1, min(tile_i, S))
    if tile_i < S:
        tile_i = min(S, max(8, (tile_i // 8) * 8))        # out-block 2nd-to-last dim: mult of 8
    num_i = pl.cdiv(S, tile_i)

    # In-kernel row chunking: keep the f32 (i_chunk, h_sub, S) product ~<= 512 KiB.
    chunk_cap = max(1, (512 * 1024) // max(1, h_sub * S * 4))
    i_chunk = _pick_chunk(tile_i, chunk_cap)              # exact divisor of tile_i
    n_chunks = tile_i // i_chunk

    out_p = pl.pallas_call(
        _make_kernel(i_chunk, n_chunks, h_sub, S),
        out_shape=jax.ShapeDtypeStruct((B, S, h_out), x.dtype),
        grid_spec=pltpu.PrefetchScalarGridSpec(
            num_scalar_prefetch=0,
            # i-tiles outer, batch inner: the rp tile index is constant across the
            # inner batch steps, so it stays resident and is not re-DMA'd per batch.
            grid=(num_i, B),
            in_specs=[
                pl.BlockSpec((1, h_sub, S), lambda it, b: (b, 0, 0)),        # x^T (scores)
                pl.BlockSpec((1, S, h_out), lambda it, b: (b, 0, 0)),        # x   (MXU RHS)
                pl.BlockSpec((tile_i, h_sub, S), lambda it, b: (it, 0, 0)),  # rp i-tile
                pl.BlockSpec((1, 1, S), lambda it, b: (b, 0, 0)),            # mask bias
            ],
            out_specs=pl.BlockSpec((1, tile_i, h_out), lambda it, b: (b, it, 0)),
            scratch_shapes=[pltpu.VMEM((tile_i, S), jnp.float32)],           # softmax weights
        ),
        compiler_params=pltpu.CompilerParams(
            # i parallel (megacore split), batch arbitrary (preserve rp residency).
            dimension_semantics=("parallel", "arbitrary"),
            vmem_limit_bytes=vmem_limit,
        ),
    )(x_t, x_m, rp_t, bias)

    return out_p[..., :H] if h_out != H else out_p


def _reference(x, relative_positions, mask=None):
    # Pure-JAX transcription of the PyTorch forward for validation.
    B, S, H = x.shape
    rp = relative_positions[:S, :S, :]
    scores = jnp.einsum('bjh,ijh->bij', x, rp)            # (B, S, S)
    if mask is not None:
        scores = jnp.where(mask[:, None, :] == 0, -jnp.inf, scores)
    w = jax.nn.softmax(scores, axis=-1)
    return jnp.einsum('bij,bjh->bih', w, x)               # (B, S, H)


if __name__ == "__main__":
    MAX_S = 16
    B, S, H = 2, 8, 32

    key = jax.random.PRNGKey(0)
    k_rp, k_x, k_m, k_rp2, k_x2 = jax.random.split(key, 5)
    # Deterministic stand-in for nn.Parameter(torch.randn(max_seq, max_seq, hidden))
    relative_positions = jax.random.normal(k_rp, (MAX_S, MAX_S, H), dtype=jnp.float32)
    x = jax.random.normal(k_x, (B, S, H), dtype=jnp.float32)

    # 1) no mask
    out = jax.block_until_ready(relative_position_encoding(x, relative_positions))
    ref = _reference(x, relative_positions)
    assert out.shape == (B, S, H)
    assert jnp.allclose(out, ref, atol=1e-2, rtol=1e-2), float(jnp.max(jnp.abs(out - ref)))

    # 2) with mask (ensure at least one kept position per batch row; fully-masked
    #    rows would produce NaN, exactly as the PyTorch masked_fill(-inf)+softmax does)
    mask = (jax.random.uniform(k_m, (B, S)) > 0.3).astype(jnp.float32)
    mask = mask.at[:, 0].set(1.0)
    out_m = jax.block_until_ready(relative_position_encoding(x, relative_positions, mask=mask))
    ref_m = _reference(x, relative_positions, mask=mask)
    assert jnp.allclose(out_m, ref_m, atol=1e-2, rtol=1e-2), float(jnp.max(jnp.abs(out_m - ref_m)))

    # 3) multi-i-tile path (S=16 -> two i-tiles) with H needing sublane padding (H=20 -> 24)
    H2, S2 = 20, 16
    rp2 = jax.random.normal(k_rp2, (MAX_S, MAX_S, H2), dtype=jnp.float32)
    x2 = jax.random.normal(k_x2, (B, S2, H2), dtype=jnp.float32)
    out2 = jax.block_until_ready(relative_position_encoding(x2, rp2))
    ref2 = _reference(x2, rp2)
    assert out2.shape == (B, S2, H2)
    assert jnp.allclose(out2, ref2, atol=1e-2, rtol=1e-2), float(jnp.max(jnp.abs(out2 - ref2)))

    # 4) bf16-streamed rp (halves HBM traffic of the dominant rp read on v5e/v6e)
    out_bf = jax.block_until_ready(
        relative_position_encoding(x, relative_positions, mask=mask,
                                   rp_stream_dtype=jnp.bfloat16))
    ref_bf = _reference(x, relative_positions.astype(jnp.bfloat16).astype(jnp.float32),
                        mask=mask)
    assert jnp.allclose(out_bf, ref_bf, atol=5e-2, rtol=5e-2), float(jnp.max(jnp.abs(out_bf - ref_bf)))

    print("KERNEL_OK")
</pallas_src>

<mosaic_0001>
module attributes {stable_mosaic.version = 11 : i64} {
  func.func @kernel(%arg0: i32, %arg1: i32, %arg2: memref<1x32x8xf32, #tpu.memory_space<vmem>>, %arg3: memref<1x8x128xf32, #tpu.memory_space<vmem>>, %arg4: memref<8x32x8xf32, #tpu.memory_space<vmem>>, %arg5: memref<1x1x8xf32, #tpu.memory_space<vmem>>, %arg6: memref<1x8x128xf32, #tpu.memory_space<vmem>>, %arg7: memref<8x8xf32, #tpu.memory_space<vmem>>) attributes {dimension_semantics = [#tpu.dimension_semantics<parallel>, #tpu.dimension_semantics<arbitrary>], iteration_bounds = array<i64: 1, 2>, scalar_prefetch = 0 : i64, scratch_operands = 1 : i64, tpu.core_type = #tpu.core_type<tc>, window_params = [{transform_indices = @transform_0, window_bounds = array<i64: 1, 32, 8>}, {transform_indices = @transform_1, window_bounds = array<i64: 1, 8, 128>}, {transform_indices = @transform_2, window_bounds = array<i64: 8, 32, 8>}, {transform_indices = @transform_3, window_bounds = array<i64: 1, 1, 8>}, {transform_indices = @transform_4, window_bounds = array<i64: 1, 8, 128>}]} {
    %c0 = arith.constant 0 : index
    %c0_0 = arith.constant 0 : index
    %c0_1 = arith.constant 0 : index
    %0 = vector.load %arg2[%c0, %c0_0, %c0_1] : memref<1x32x8xf32, #tpu.memory_space<vmem>>, vector<1x32x8xf32>
    %1 = vector.shape_cast %0 : vector<1x32x8xf32> to vector<32x8xf32>
    %2 = vector.shape_cast %1 : vector<32x8xf32> to vector<1x32x8xf32>
    %3 = vector.broadcast %2 : vector<1x32x8xf32> to vector<8x32x8xf32>
    %c0_2 = arith.constant 0 : index
    %c0_3 = arith.constant 0 : index
    %c0_4 = arith.constant 0 : index
    %4 = vector.load %arg5[%c0_2, %c0_3, %c0_4] : memref<1x1x8xf32, #tpu.memory_space<vmem>>, vector<1x1x8xf32>
    %5 = vector.shape_cast %4 : vector<1x1x8xf32> to vector<1x8xf32>
    %6 = vector.shape_cast %5 : vector<1x8xf32> to vector<1x8xf32>
    %7 = vector.broadcast %6 : vector<1x8xf32> to vector<8x8xf32>
    %c0_i32 = arith.constant 0 : i32
    %c8_i32 = arith.constant 8 : i32
    %8 = arith.muli %c0_i32, %c8_i32 : i32
    %9 = tpu.assume_multiple %8, 8 : i32
    %10 = arith.index_cast %9 : i32 to index
    %c0_5 = arith.constant 0 : index
    %c0_6 = arith.constant 0 : index
    %11 = vector.load %arg4[%10, %c0_5, %c0_6] : memref<8x32x8xf32, #tpu.memory_space<vmem>>, vector<8x32x8xf32>
    %12 = arith.mulf %11, %3 : vector<8x32x8xf32>
    %cst = arith.constant dense<0.000000e+00> : vector<8x8xf32>
    %13 = vector.multi_reduction <add>, %12, %cst [1] : vector<8x32x8xf32> to vector<8x8xf32>
    %14 = arith.addf %13, %7 : vector<8x8xf32>
    %cst_7 = arith.constant dense<0xFF800000> : vector<8xf32>
    %15 = vector.multi_reduction <maximumf>, %14, %cst_7 [1] : vector<8x8xf32> to vector<8xf32>
    %16 = vector.shape_cast %15 : vector<8xf32> to vector<8x1xf32>
    %17 = vector.broadcast %16 : vector<8x1xf32> to vector<8x8xf32>
    %18 = arith.subf %14, %17 : vector<8x8xf32>
    %19 = math.exp %18 : vector<8x8xf32>
    %cst_8 = arith.constant dense<0.000000e+00> : vector<8xf32>
    %20 = vector.multi_reduction <add>, %19, %cst_8 [1] : vector<8x8xf32> to vector<8xf32>
    %21 = vector.shape_cast %20 : vector<8xf32> to vector<8x1xf32>
    %22 = tpu.reciprocal %21 {approx = true} : vector<8x1xf32> -> vector<8x1xf32>
    %23 = vector.broadcast %22 : vector<8x1xf32> to vector<8x8xf32>
    %24 = arith.mulf %19, %23 : vector<8x8xf32>
    %25 = arith.index_cast %9 : i32 to index
    %c0_9 = arith.constant 0 : index
    %26 = vector.load %arg7[%25, %c0_9] : memref<8x8xf32, #tpu.memory_space<vmem>>, vector<8x8xf32>
    tpu.vector_store %arg7[%25, %c0_9], %24 {strides = array<i32>} : memref<8x8xf32, #tpu.memory_space<vmem>>, vector<8x8xf32>,
    %c1_i32 = arith.constant 1 : i32
    %c0_10 = arith.constant 0 : index
    %c0_11 = arith.constant 0 : index
    %c0_12 = arith.constant 0 : index
    %27 = vector.load %arg3[%c0_10, %c0_11, %c0_12] : memref<1x8x128xf32, #tpu.memory_space<vmem>>, vector<1x8x128xf32>
    %28 = vector.shape_cast %27 : vector<1x8x128xf32> to vector<8x128xf32>
    %c0_13 = arith.constant 0 : index
    %c0_14 = arith.constant 0 : index
    %29 = vector.load %arg7[%c0_13, %c0_14] : memref<8x8xf32, #tpu.memory_space<vmem>>, vector<8x8xf32>
    %cst_15 = arith.constant dense<0.000000e+00> : vector<8x128xf32>
    %30 = tpu.matmul %29, %28, %cst_15 {dimension_numbers = #tpu.dot_dimension_numbers<[1], [0], [0], [1], [0, 0, 1, 1], [], []>} : vector<8x8xf32>, vector<8x128xf32>, vector<8x128xf32> -> vector<8x128xf32>
    %c0_16 = arith.constant 0 : index
    %c0_17 = arith.constant 0 : index
    %c0_18 = arith.constant 0 : index
    %31 = vector.load %arg6[%c0_16, %c0_17, %c0_18] : memref<1x8x128xf32, #tpu.memory_space<vmem>>, vector<1x8x128xf32>
    %32 = vector.shape_cast %31 : vector<1x8x128xf32> to vector<8x128xf32>
    %33 = vector.shape_cast %30 : vector<8x128xf32> to vector<1x8x128xf32>
    tpu.vector_store %arg6[%c0_16, %c0_17, %c0_18], %33 {strides = array<i32>} : memref<1x8x128xf32, #tpu.memory_space<vmem>>, vector<1x8x128xf32>,
    return
  }
  func.func @transform_0(%arg0: i32, %arg1: i32) -> (i32, i32, i32) {
    %c0_i32 = arith.constant 0 : i32
    %c0_i32_0 = arith.constant 0 : i32
    %c0_i32_1 = arith.constant 0 : i32
    return %arg1, %c0_i32, %c0_i32_0 : i32, i32, i32
  }
  func.func @transform_1(%arg0: i32, %arg1: i32) -> (i32, i32, i32) {
    %c0_i32 = arith.constant 0 : i32
    %c0_i32_0 = arith.constant 0 : i32
    %c0_i32_1 = arith.constant 0 : i32
    return %arg1, %c0_i32, %c0_i32_0 : i32, i32, i32
  }
  func.func @transform_2(%arg0: i32, %arg1: i32) -> (i32, i32, i32) {
    %c0_i32 = arith.constant 0 : i32
    %c0_i32_0 = arith.constant 0 : i32
    %c0_i32_1 = arith.constant 0 : i32
    return %arg0, %c0_i32, %c0_i32_0 : i32, i32, i32
  }
  func.func @transform_3(%arg0: i32, %arg1: i32) -> (i32, i32, i32) {
    %c0_i32 = arith.constant 0 : i32
    %c0_i32_0 = arith.constant 0 : i32
    %c0_i32_1 = arith.constant 0 : i32
    return %arg1, %c0_i32, %c0_i32_0 : i32, i32, i32
  }
  func.func @transform_4(%arg0: i32, %arg1: i32) -> (i32, i32, i32) {
    %c0_i32 = arith.constant 0 : i32
    %c0_i32_0 = arith.constant 0 : i32
    return %arg1, %arg0, %c0_i32 : i32, i32, i32
  }
}

</mosaic_0001>

<llo_original>
// kernel: tpu_custom_call.1
$region0: #{tpu_custom_call.1}
  #allocation0 [shape = 'u32[]', space=smem, size = 0x4, offset = 0x4, fixed_abs, tag = 'smem constant byte address 0x4 - core index']
  #allocation1 [shape = 'u32[144,128]{1,0:T(1,128)}', space=vmem, size = 0x12000, scoped, tag = 'internal scratch']
  #allocation2 [shape = 'f32[8,8]{1,0:T(8,128)}', space=vmem, size = 0x1000, scoped, tag = 'scratch operand']
  %s0 = inlined_call_operand.vmem [shape: f32[2,32,8], index: 0, kind: input, shape index: {}]
  %s1 = inlined_call_operand.vmem [shape: f32[2,8,128], index: 1, kind: input, shape index: {}]
  %s2 = inlined_call_operand.vmem [shape: f32[8,32,8], index: 2, kind: input, shape index: {}]
  %s3 = inlined_call_operand.vmem [shape: f32[2,1,8], index: 3, kind: input, shape index: {}]
  %s4 = inlined_call_operand.hbm [shape: f32[2,8,128], index: 4, kind: output, shape index: {}]
  %s5 = sld [smem:[#allocation0]]
  $region49: #{tpu_custom_call.1} parent=0
    _
  %s7 = ssub.s32 1, %s5
  %s8 = scalar_select 0, %s7, %s5
  $region1: #{tpu_custom_call.1} parent=0
    #allocation3 [shape = 'u8[8192]{0}', space=vmem, size = 0x2000, scoped, tag = 'output window, operand 0']
    #allocation4 [shape = 's32[2]{0}', space=sflag, size = 0x8, scoped, tag = 'scoped memory for tpu_custom_call.1']
    %9 = vsyncpa [#allocation4], 0
    %s10 = scalar_lea.sflag [#allocation4], 1
    %11 = vsyncpa %s10, 0
    loop: start=0, step=1, limit=4
    $region2: #{tpu_custom_call.1} parent=1 // loop_pre_header
      _
    $region3: #{tpu_custom_call.1} parent=1 // loop_header
      %s13 = sphi 0, %s17
      %p14 = scmp.ge.s32.totalorder %s13, 4
      %s20 = sphi 0, %s32
      %s21 = sphi 0, %s28
      %s22 = sphi 0, %s20
      %s23 = sphi 0, %s21
      %s24 = sphi 0, %s22
      %s25 = sphi 0, %s23
      %s35 = sphi 0, %s37
      %s38 = sphi 0, %s35
      %s39 = sphi 0, %s38
      %s55 = sphi 0, %s39
      %s61 = sphi 0, %s63
      %s64 = sphi 0, %s61
      %s65 = sphi 0, %s64
      %s81 = sphi 0, %s65
      %s87 = sphi 0, %s89
      %s90 = sphi 0, %s87
      %s91 = sphi 0, %s90
      %s107 = sphi 0, %s91
      %s113 = sphi 0, %s115
      %s116 = sphi 0, %s113
      %s117 = sphi 0, %s116
      %s133 = sphi 0, %s117
      %s141 = sphi 0, %s143
      %s144 = sphi 0, %s141
      %s145 = sphi 0, %s144
      %s161 = sphi 0, %s145
    $region4: #{tpu_custom_call.1} parent=1 // loop_header_branch
      %16 = sbr.rel (%p14) target = $region8
    $region5: #{tpu_custom_call.1} parent=1 // loop_body
      %s18 = ssub.s32 %s13, 1
      %s19 = ssub.s32 %s13, 2
      %s26 = sadd.s32 1, %s21
      %p27 = scmp.ge.s32.totalorder %s26, 2
      %s28 = scalar_select %p27, 0, %s26
      %s29 = sadd.s32 1, %s20
      %s30 = scalar_select %p27, %s29, %s20
      %p31 = scmp.ge.s32.totalorder %s30, 1
      %s32 = scalar_select %p31, 0, %s30
      %s33 = ssub.s32 %s21, %s28
      %p34 = scmp.eq.s32.totalorder %s33, 0
      %s36 = sadd.s32 %s35, 1
      %s37 = scalar_select %p34, %s35, %s36
      %p40 = pneg %p34
      %p41 = scmp.eq.s32.totalorder %s13, 1
      %p42 = por %p40, %p41
      %p43 = scmp.ne.s32.totalorder %s35, %s38
      %p44 = scmp.eq.s32.totalorder %s13, 0
      %p45 = por %p43, %p44
      %p46 = scmp.ne.s32.totalorder %s35, %s38
      %p47 = scmp.eq.s32.totalorder %s18, 1
      %p48 = por %p46, %p47
      %p49 = scmp.ne.s32.totalorder %s38, %s39
      %p50 = scmp.eq.s32.totalorder %s18, 0
      %p51 = por %p49, %p50
      %p52 = scmp.ne.s32.totalorder %s38, %s39
      %p53 = scmp.eq.s32.totalorder %s19, 1
      %p54 = por %p52, %p53
      %p56 = scmp.ne.s32.totalorder %s39, %s55
      %p57 = scmp.eq.s32.totalorder %s19, 0
      %p58 = por %p56, %p57
      %s59 = ssub.s32 %s21, %s28
      %p60 = scmp.eq.s32.totalorder %s59, 0
      %s62 = sadd.s32 %s61, 1
      %s63 = scalar_select %p60, %s61, %s62
      %p66 = pneg %p60
      %p67 = scmp.eq.s32.totalorder %s13, 1
      %p68 = por %p66, %p67
      %p69 = scmp.ne.s32.totalorder %s61, %s64
      %p70 = scmp.eq.s32.totalorder %s13, 0
      %p71 = por %p69, %p70
      %p72 = scmp.ne.s32.totalorder %s61, %s64
      %p73 = scmp.eq.s32.totalorder %s18, 1
      %p74 = por %p72, %p73
      %p75 = scmp.ne.s32.totalorder %s64, %s65
      %p76 = scmp.eq.s32.totalorder %s18, 0
      %p77 = por %p75, %p76
      %p78 = scmp.ne.s32.totalorder %s64, %s65
      %p79 = scmp.eq.s32.totalorder %s19, 1
      %p80 = por %p78, %p79
      %p82 = scmp.ne.s32.totalorder %s65, %s81
      %p83 = scmp.eq.s32.totalorder %s19, 0
      %p84 = por %p82, %p83
      %s85 = ssub.s32 %s20, %s32
      %p86 = scmp.eq.s32.totalorder %s85, 0
      %s88 = sadd.s32 %s87, 1
      %s89 = scalar_select %p86, %s87, %s88
      %p92 = pneg %p86
      %p93 = scmp.eq.s32.totalorder %s13, 1
      %p94 = por %p92, %p93
      %p95 = scmp.ne.s32.totalorder %s87, %s90
      %p96 = scmp.eq.s32.totalorder %s13, 0
      %p97 = por %p95, %p96
      %p98 = scmp.ne.s32.totalorder %s87, %s90
      %p99 = scmp.eq.s32.totalorder %s18, 1
      %p100 = por %p98, %p99
      %p101 = scmp.ne.s32.totalorder %s90, %s91
      %p102 = scmp.eq.s32.totalorder %s18, 0
      %p103 = por %p101, %p102
      %p104 = scmp.ne.s32.totalorder %s90, %s91
      %p105 = scmp.eq.s32.totalorder %s19, 1
      %p106 = por %p104, %p105
      %p108 = scmp.ne.s32.totalorder %s91, %s107
      %p109 = scmp.eq.s32.totalorder %s19, 0
      %p110 = por %p108, %p109
      %s111 = ssub.s32 %s21, %s28
      %p112 = scmp.eq.s32.totalorder %s111, 0
      %s114 = sadd.s32 %s113, 1
      %s115 = scalar_select %p112, %s113, %s114
      %p118 = pneg %p112
      %p119 = scmp.eq.s32.totalorder %s13, 1
      %p120 = por %p118, %p119
      %p121 = scmp.ne.s32.totalorder %s113, %s116
      %p122 = scmp.eq.s32.totalorder %s13, 0
      %p123 = por %p121, %p122
      %p124 = scmp.ne.s32.totalorder %s113, %s116
      %p125 = scmp.eq.s32.totalorder %s18, 1
      %p126 = por %p124, %p125
      %p127 = scmp.ne.s32.totalorder %s116, %s117
      %p128 = scmp.eq.s32.totalorder %s18, 0
      %p129 = por %p127, %p128
      %p130 = scmp.ne.s32.totalorder %s116, %s117
      %p131 = scmp.eq.s32.totalorder %s19, 1
      %p132 = por %p130, %p131
      %p134 = scmp.ne.s32.totalorder %s117, %s133
      %p135 = scmp.eq.s32.totalorder %s19, 0
      %p136 = por %p134, %p135
      %s137 = ssub.s32 %s21, %s28
      %s138 = ssub.s32 %s20, %s32
      %s139 = sor.u32 %s137, %s138
      %p140 = scmp.eq.s32.totalorder %s139, 0
      %s142 = sadd.s32 %s141, 1
      %s143 = scalar_select %p140, %s141, %s142
      %p146 = pneg %p140
      %p147 = scmp.eq.s32.totalorder %s13, 1
      %p148 = por %p146, %p147
      %p149 = scmp.ne.s32.totalorder %s141, %s144
      %p150 = scmp.eq.s32.totalorder %s13, 0
      %p151 = por %p149, %p150
      %p152 = scmp.ne.s32.totalorder %s141, %s144
      %p153 = scmp.eq.s32.totalorder %s18, 1
      %p154 = por %p152, %p153
      %p155 = scmp.ne.s32.totalorder %s144, %s145
      %p156 = scmp.eq.s32.totalorder %s18, 0
      %p157 = por %p155, %p156
      %p158 = scmp.ne.s32.totalorder %s144, %s145
      %p159 = scmp.eq.s32.totalorder %s19, 1
      %p160 = por %p158, %p159
      %p162 = scmp.ne.s32.totalorder %s145, %s161
      %p163 = scmp.eq.s32.totalorder %s19, 0
      %p164 = por %p162, %p163
      %p165 = scmp.le.s32.totalorder 1, %s13
      %p166 = scmp.lt.s32.totalorder %s13, 3
      %p167 = pnand %p165, %p166
      %p168 = pneg %p167
      // Predicated region
      $region9: #{tpu_custom_call.1} parent=5 // pred_check
        _
      $region10: #{tpu_custom_call.1} parent=5 // pred_check_branch
        %170 = sbr.rel (%p167) target = $region12
      $region11: #{tpu_custom_call.1} parent=5 // pred_region
        %s171 = ssub.s32 %s13, 1
        // Predicated region
        $region13: #{tpu_custom_call.1} parent=11 // pred_check
          %p172 = pneg %p103
        $region14: #{tpu_custom_call.1} parent=11 // pred_check_branch
          %174 = sbr.rel (%p172) target = $region16
        $region15: #{tpu_custom_call.1} parent=11 // pred_region
          %s175 = smul.u32 8, %s22
          %p176 = scmp.lt.s32.totalorder %s175, 7
          %s177 = scalar_select %p176, %s175, 7
          %s178 = smul.addr %s177, 4
          %s179 = smul.addr %s178, 8
          %s180 = scalar_lea.vmem %s2, %s179
          %s181 = smul.u32 8, %s22
        $region16: #{tpu_custom_call.1} parent=11 // pred_fallthru
          _
      $region12: #{tpu_custom_call.1} parent=5 // pred_fallthru
        _
      %p182 = scmp.lt.s32.totalorder %s13, 2
      // Predicated region
      $region17: #{tpu_custom_call.1} parent=5 // pred_check
        %p183 = pneg %p182
      $region18: #{tpu_custom_call.1} parent=5 // pred_check_branch
        %185 = sbr.rel (%p183) target = $region20
      $region19: #{tpu_custom_call.1} parent=5 // pred_region
        // Predicated region
        $region21: #{tpu_custom_call.1} parent=19 // pred_check
          %p186 = pneg %p45
        $region22: #{tpu_custom_call.1} parent=19 // pred_check_branch
          %188 = sbr.rel (%p186) target = $region24
        $region23: #{tpu_custom_call.1} parent=19 // pred_region
          %p189 = scmp.lt.s32.totalorder %s21, 1
          %s190 = scalar_select %p189, %s21, 1
          %s191 = smul.addr %s190, 4
          %s192 = smul.addr %s191, 8
          %s193 = scalar_lea.vmem %s0, %s192
        $region24: #{tpu_custom_call.1} parent=19 // pred_fallthru
          _
        // Predicated region
        $region25: #{tpu_custom_call.1} parent=19 // pred_check
          %p194 = pneg %p71
        $region26: #{tpu_custom_call.1} parent=19 // pred_check_branch
          %196 = sbr.rel (%p194) target = $region28
        $region27: #{tpu_custom_call.1} parent=19 // pred_region
          %p197 = scmp.lt.s32.totalorder %s21, 1
          %s198 = scalar_select %p197, %s21, 1
          %s199 = smul.addr %s198, 8
          %s200 = scalar_lea.vmem %s1, %s199
        $region28: #{tpu_custom_call.1} parent=19 // pred_fallthru
          _
        // Predicated region
        $region29: #{tpu_custom_call.1} parent=19 // pred_check
          %p201 = pneg %p123
        $region30: #{tpu_custom_call.1} parent=19 // pred_check_branch
          %203 = sbr.rel (%p201) target = $region32
        $region31: #{tpu_custom_call.1} parent=19 // pred_region
          %p204 = scmp.lt.s32.totalorder %s21, 1
          %s205 = scalar_select %p204, %s21, 1
          %s206 = scalar_lea.vmem %s3, %s205
        $region32: #{tpu_custom_call.1} parent=19 // pred_fallthru
          _
      $region20: #{tpu_custom_call.1} parent=5 // pred_fallthru
        _
      %p207 = scmp.le.s32.totalorder 1, %s13
      %p208 = scmp.lt.s32.totalorder %s13, 3
      %p209 = pnand %p207, %p208
      %p210 = pneg %p209
      // Predicated region
      $region33: #{tpu_custom_call.1} parent=5 // pred_check
        _
      $region34: #{tpu_custom_call.1} parent=5 // pred_check_branch
        %212 = sbr.rel (%p209) target = $region36
      $region35: #{tpu_custom_call.1} parent=5 // pred_region
        %s213 = ssub.s32 %s13, 1
        %p214 = scmp.lt.s32.totalorder %s23, 1
        %s215 = scalar_select %p214, %s23, 1
        %s216 = smul.addr %s215, 4
        %s217 = smul.addr %s216, 8
        %s218 = scalar_lea.vmem %s0, %s217
        %p219 = pneg %p51
        %p220 = pneg %p48
        %p221 = scmp.lt.s32.totalorder %s23, 1
        %s222 = scalar_select %p221, %s23, 1
        %s223 = smul.addr %s222, 8
        %s224 = scalar_lea.vmem %s1, %s223
        %p225 = pneg %p77
        %p226 = pneg %p74
        %s227 = smul.u32 8, %s22
        %p228 = scmp.lt.s32.totalorder %s227, 7
        %s229 = scalar_select %p228, %s227, 7
        %s230 = smul.addr %s229, 4
        %s231 = smul.addr %s230, 8
        %s232 = scalar_lea.vmem %s2, %s231
        %p233 = pneg %p103
        %p234 = pneg %p100
        %p235 = scmp.lt.s32.totalorder %s23, 1
        %s236 = scalar_select %p235, %s23, 1
        %s237 = scalar_lea.vmem %s3, %s236
        %p238 = pneg %p129
        %p239 = pneg %p126
        %p240 = pneg %p157
        %p241 = pneg %p154
        %s242 = sand.u32 %s144, 1
        %s243 = scalar_lea.sflag [#allocation4], %s242
        %s244 = sand.u32 %s144, 1
        %s245 = smul.addr %s244, 8
        %s246 = scalar_lea.vmem [#allocation3], %s245
        %p247 = scmp.lt.s32.totalorder %s23, 1
        %s248 = scalar_select %p247, %s23, 1
        %s249 = smul.addr %s248, 4
        %s250 = smul.addr %s249, 8
        %s251 = scalar_lea.vmem %s0, %s250
        %p252 = scmp.lt.s32.totalorder %s23, 1
        %s253 = scalar_select %p252, %s23, 1
        %s254 = smul.addr %s253, 8
        %s255 = scalar_lea.vmem %s1, %s254
        %s256 = smul.u32 8, %s22
        %p257 = scmp.lt.s32.totalorder %s256, 7
        %s258 = scalar_select %p257, %s256, 7
        %s259 = smul.addr %s258, 4
        %s260 = smul.addr %s259, 8
        %s261 = scalar_lea.vmem %s2, %s260
        %s262 = smul.u32 8, %s22
        %p263 = scmp.lt.s32.totalorder %s23, 1
        %s264 = scalar_select %p263, %s23, 1
        %s265 = scalar_lea.vmem %s3, %s264
        %v266 = vld [vmem:[%s251] sm:$0xff]
        %v267 = vld [vmem:[%s251 + $0x8] sm:$0xff]
        %v268 = vld [vmem:[%s251 + $0x10] sm:$0xff]
        %v269 = vld [vmem:[%s251 + $0x18] sm:$0xff]
        %v270 = vld [vmem:[%s265] sm:$0x1]
        %v272 = vlaneseq
        %v273 = vshrl.u32 %v272, 7
        %v274 = vsub.s32 0, %v273
        %v275 = vrot.slane %v270, %v274
        %s277 = smul.u32 0, 32
        %s278 = scalar_lea.vmem %s261, %s277
        %v279 = vld [vmem:[%s278] sm:$0xff]
        %v280 = vld [vmem:[%s278 + $0x8] sm:$0xff]
        %v281 = vld [vmem:[%s278 + $0x10] sm:$0xff]
        %v282 = vld [vmem:[%s278 + $0x18] sm:$0xff]
        %v283 = vld [vmem:[%s278 + $0x20] sm:$0xff]
        %v284 = vld [vmem:[%s278 + $0x28] sm:$0xff]
        %v285 = vld [vmem:[%s278 + $0x30] sm:$0xff]
        %v286 = vld [vmem:[%s278 + $0x38] sm:$0xff]
        %v287 = vld [vmem:[%s278 + $0x40] sm:$0xff]
        %v288 = vld [vmem:[%s278 + $0x48] sm:$0xff]
        %v289 = vld [vmem:[%s278 + $0x50] sm:$0xff]
        %v290 = vld [vmem:[%s278 + $0x58] sm:$0xff]
        %v291 = vld [vmem:[%s278 + $0x60] sm:$0xff]
        %v292 = vld [vmem:[%s278 + $0x68] sm:$0xff]
        %v293 = vld [vmem:[%s278 + $0x70] sm:$0xff]
        %v294 = vld [vmem:[%s278 + $0x78] sm:$0xff]
        %v295 = vld [vmem:[%s278 + $0x80] sm:$0xff]
        %v296 = vld [vmem:[%s278 + $0x88] sm:$0xff]
        %v297 = vld [vmem:[%s278 + $0x90] sm:$0xff]
        %v298 = vld [vmem:[%s278 + $0x98] sm:$0xff]
        %v299 = vld [vmem:[%s278 + $0xa0] sm:$0xff]
        %v300 = vld [vmem:[%s278 + $0xa8] sm:$0xff]
        %v301 = vld [vmem:[%s278 + $0xb0] sm:$0xff]
        %v302 = vld [vmem:[%s278 + $0xb8] sm:$0xff]
        %v303 = vld [vmem:[%s278 + $0xc0] sm:$0xff]
        %v304 = vld [vmem:[%s278 + $0xc8] sm:$0xff]
        %v305 = vld [vmem:[%s278 + $0xd0] sm:$0xff]
        %v306 = vld [vmem:[%s278 + $0xd8] sm:$0xff]
        %v307 = vld [vmem:[%s278 + $0xe0] sm:$0xff]
        %v308 = vld [vmem:[%s278 + $0xe8] sm:$0xff]
        %v309 = vld [vmem:[%s278 + $0xf0] sm:$0xff]
        %v310 = vld [vmem:[%s278 + $0xf8] sm:$0xff]
        %v311 = vmul.f32 %v279, %v266
        %v312 = vmul.f32 %v280, %v267
        %v313 = vmul.f32 %v281, %v268
        %v314 = vmul.f32 %v282, %v269
        %v315 = vmul.f32 %v283, %v266
        %v316 = vmul.f32 %v284, %v267
        %v317 = vmul.f32 %v285, %v268
        %v318 = vmul.f32 %v286, %v269
        %v319 = vmul.f32 %v287, %v266
        %v320 = vmul.f32 %v288, %v267
        %v321 = vmul.f32 %v289, %v268
        %v322 = vmul.f32 %v290, %v269
        %v323 = vmul.f32 %v291, %v266
        %v324 = vmul.f32 %v292, %v267
        %v325 = vmul.f32 %v293, %v268
        %v326 = vmul.f32 %v294, %v269
        %v327 = vmul.f32 %v295, %v266
        %v328 = vmul.f32 %v296, %v267
        %v329 = vmul.f32 %v297, %v268
        %v330 = vmul.f32 %v298, %v269
        %v331 = vmul.f32 %v299, %v266
        %v332 = vmul.f32 %v300, %v267
        %v333 = vmul.f32 %v301, %v268
        %v334 = vmul.f32 %v302, %v269
        %v335 = vmul.f32 %v303, %v266
        %v336 = vmul.f32 %v304, %v267
        %v337 = vmul.f32 %v305, %v268
        %v338 = vmul.f32 %v306, %v269
        %v339 = vmul.f32 %v307, %v266
        %v340 = vmul.f32 %v308, %v267
        %v341 = vmul.f32 %v309, %v268
        %v342 = vmul.f32 %v310, %v269
        %vm343 = vcmask 64512
        %v344 = vsel %vm343, %v311, 0.0
        %v345 = vsel %vm343, %v312, 0.0
        %v346 = vadd.f32 %v344, %v345
        %v347 = vsel %vm343, %v313, 0.0
        %v348 = vadd.f32 %v346, %v347
        %v349 = vsel %vm343, %v314, 0.0
        %v350 = vadd.f32 %v348, %v349
        %v351 = vrot.slane %v350, 4
        %v352 = vadd.f32 %v350, %v351
        %v353 = vrot.slane %v352, 2
        %v354 = vadd.f32 %v352, %v353
        %v355 = vrot.slane %v354, 1
        %v356 = vadd.f32 %v354, %v355
        %v357 = vsel %vm343, %v315, 0.0
        %v358 = vsel %vm343, %v316, 0.0
        %v359 = vadd.f32 %v357, %v358
        %v360 = vsel %vm343, %v317, 0.0
        %v361 = vadd.f32 %v359, %v360
        %v362 = vsel %vm343, %v318, 0.0
        %v363 = vadd.f32 %v361, %v362
        %v364 = vrot.slane %v363, 4
        %v365 = vadd.f32 %v363, %v364
        %v366 = vrot.slane %v365, 2
        %v367 = vadd.f32 %v365, %v366
        %v368 = vrot.slane %v367, 1
        %v369 = vadd.f32 %v367, %v368
        %v370 = vsel %vm343, %v319, 0.0
        %v371 = vsel %vm343, %v320, 0.0
        %v372 = vadd.f32 %v370, %v371
        %v373 = vsel %vm343, %v321, 0.0
        %v374 = vadd.f32 %v372, %v373
        %v375 = vsel %vm343, %v322, 0.0
        %v376 = vadd.f32 %v374, %v375
        %v377 = vrot.slane %v376, 4
        %v378 = vadd.f32 %v376, %v377
        %v379 = vrot.slane %v378, 2
        %v380 = vadd.f32 %v378, %v379
        %v381 = vrot.slane %v380, 1
        %v382 = vadd.f32 %v380, %v381
        %v383 = vsel %vm343, %v323, 0.0
        %v384 = vsel %vm343, %v324, 0.0
        %v385 = vadd.f32 %v383, %v384
        %v386 = vsel %vm343, %v325, 0.0
        %v387 = vadd.f32 %v385, %v386
        %v388 = vsel %vm343, %v326, 0.0
        %v389 = vadd.f32 %v387, %v388
        %v390 = vrot.slane %v389, 4
        %v391 = vadd.f32 %v389, %v390
        %v392 = vrot.slane %v391, 2
        %v393 = vadd.f32 %v391, %v392
        %v394 = vrot.slane %v393, 1
        %v395 = vadd.f32 %v393, %v394
        %v396 = vsel %vm343, %v327, 0.0
        %v397 = vsel %vm343, %v328, 0.0
        %v398 = vadd.f32 %v396, %v397
        %v399 = vsel %vm343, %v329, 0.0
        %v400 = vadd.f32 %v398, %v399
        %v401 = vsel %vm343, %v330, 0.0
        %v402 = vadd.f32 %v400, %v401
        %v403 = vrot.slane %v402, 4
        %v404 = vadd.f32 %v402, %v403
        %v405 = vrot.slane %v404, 2
        %v406 = vadd.f32 %v404, %v405
        %v407 = vrot.slane %v406, 1
        %v408 = vadd.f32 %v406, %v407
        %v409 = vsel %vm343, %v331, 0.0
        %v410 = vsel %vm343, %v332, 0.0
        %v411 = vadd.f32 %v409, %v410
        %v412 = vsel %vm343, %v333, 0.0
        %v413 = vadd.f32 %v411, %v412
        %v414 = vsel %vm343, %v334, 0.0
        %v415 = vadd.f32 %v413, %v414
        %v416 = vrot.slane %v415, 4
        %v417 = vadd.f32 %v415, %v416
        %v418 = vrot.slane %v417, 2
        %v419 = vadd.f32 %v417, %v418
        %v420 = vrot.slane %v419, 1
        %v421 = vadd.f32 %v419, %v420
        %v422 = vsel %vm343, %v335, 0.0
        %v423 = vsel %vm343, %v336, 0.0
        %v424 = vadd.f32 %v422, %v423
        %v425 = vsel %vm343, %v337, 0.0
        %v426 = vadd.f32 %v424, %v425
        %v427 = vsel %vm343, %v338, 0.0
        %v428 = vadd.f32 %v426, %v427
        %v429 = vrot.slane %v428, 4
        %v430 = vadd.f32 %v428, %v429
        %v431 = vrot.slane %v430, 2
        %v432 = vadd.f32 %v430, %v431
        %v433 = vrot.slane %v432, 1
        %v434 = vadd.f32 %v432, %v433
        %v435 = vsel %vm343, %v339, 0.0
        %v436 = vsel %vm343, %v340, 0.0
        %v437 = vadd.f32 %v435, %v436
        %v438 = vsel %vm343, %v341, 0.0
        %v439 = vadd.f32 %v437, %v438
        %v440 = vsel %vm343, %v342, 0.0
        %v441 = vadd.f32 %v439, %v440
        %v442 = vrot.slane %v441, 4
        %v443 = vadd.f32 %v441, %v442
        %v444 = vrot.slane %v443, 2
        %v445 = vadd.f32 %v443, %v444
        %v446 = vrot.slane %v445, 1
        %v447 = vadd.f32 %v445, %v446
        %v448 = vadd.f32 %v356, %v275
        %v449 = vadd.f32 %v369, %v275
        %v450 = vadd.f32 %v382, %v275
        %v451 = vadd.f32 %v395, %v275
        %v452 = vadd.f32 %v408, %v275
        %v453 = vadd.f32 %v421, %v275
        %v454 = vadd.f32 %v434, %v275
        %v455 = vadd.f32 %v447, %v275
        %v464 = vrot.slane %v449, 7
        %vm465 = vcmask 1041409
        %v466 = vsel %vm465, %v464, %v448
        %v467 = vrot.slane %v450, 6
        %vm468 = vcmask 1042434
        %v469 = vsel %vm468, %v467, %v466
        %v470 = vrot.slane %v451, 5
        %vm471 = vcmask 1043459
        %v472 = vsel %vm471, %v470, %v469
        %v473 = vrot.slane %v452, 4
        %vm474 = vcmask 1044484
        %v475 = vsel %vm474, %v473, %v472
        %v476 = vrot.slane %v453, 3
        %vm477 = vcmask 1045509
        %v478 = vsel %vm477, %v476, %v475
        %v479 = vrot.slane %v454, 2
        %vm480 = vcmask 1046534
        %v481 = vsel %vm480, %v479, %v478
        %v482 = vrot.slane %v455, 1
        %vm483 = vcmask 1047559
        %v484 = vsel %vm483, %v482, %v481
        %v486 = vsel %vm343, %v484, -inf
        %487 = vmax.xlane.f32.xlu0 %v486
        %v488 = vpop.xlane.xlu0 %487
        %v490 = vrot.slane %v488, 1
        %v491 = vrot.slane %v488, 2
        %v492 = vrot.slane %v488, 3
        %v493 = vrot.slane %v488, 4
        %v494 = vrot.slane %v488, 5
        %v495 = vrot.slane %v488, 6
        %v496 = vrot.slane %v488, 7
        %v505 = vsub.f32 %v448, %v488
        %v506 = vsub.f32 %v449, %v490
        %v507 = vsub.f32 %v450, %v491
        %v508 = vsub.f32 %v451, %v492
        %v509 = vsub.f32 %v452, %v493
        %v510 = vsub.f32 %v453, %v494
        %v511 = vsub.f32 %v454, %v495
        %v512 = vsub.f32 %v455, %v496
        %v513 = vmul.f32 %v505, 1.442695
        %v514 = vpow.pop %v513
        %v515 = vmul.f32 %v506, 1.442695
        %v516 = vpow.pop %v515
        %v517 = vmul.f32 %v507, 1.442695
        %v518 = vpow.pop %v517
        %v519 = vmul.f32 %v508, 1.442695
        %v520 = vpow.pop %v519
        %v521 = vmul.f32 %v509, 1.442695
        %v522 = vpow.pop %v521
        %v523 = vmul.f32 %v510, 1.442695
        %v524 = vpow.pop %v523
        %v525 = vmul.f32 %v511, 1.442695
        %v526 = vpow.pop %v525
        %v527 = vmul.f32 %v512, 1.442695
        %v528 = vpow.pop %v527
        %v537 = vrot.slane %v516, 7
        %v538 = vsel %vm465, %v537, %v514
        %v539 = vrot.slane %v518, 6
        %v540 = vsel %vm468, %v539, %v538
        %v541 = vrot.slane %v520, 5
        %v542 = vsel %vm471, %v541, %v540
        %v543 = vrot.slane %v522, 4
        %v544 = vsel %vm474, %v543, %v542
        %v545 = vrot.slane %v524, 3
        %v546 = vsel %vm477, %v545, %v544
        %v547 = vrot.slane %v526, 2
        %v548 = vsel %vm480, %v547, %v546
        %v549 = vrot.slane %v528, 1
        %v550 = vsel %vm483, %v549, %v548
        %v552 = vsel %vm343, %v550, 0.0
        %553 = vadd.xlane.f32.xlu0 %v552
        %v554 = vpop.xlane.xlu0 %553
        %v555 = vrcp.pop %v554
        %v557 = vrot.slane %v555, 1
        %v558 = vrot.slane %v555, 2
        %v559 = vrot.slane %v555, 3
        %v560 = vrot.slane %v555, 4
        %v561 = vrot.slane %v555, 5
        %v562 = vrot.slane %v555, 6
        %v563 = vrot.slane %v555, 7
        %v572 = vmul.f32 %v514, %v555
        %v573 = vmul.f32 %v516, %v557
        %v574 = vmul.f32 %v518, %v558
        %v575 = vmul.f32 %v520, %v559
        %v576 = vmul.f32 %v522, %v560
        %v577 = vmul.f32 %v524, %v561
        %v578 = vmul.f32 %v526, %v562
        %v579 = vmul.f32 %v528, %v563
        %v588 = vrot.slane %v573, 7
        %v589 = vsel %vm465, %v588, %v572
        %v590 = vrot.slane %v574, 6
        %v591 = vsel %vm468, %v590, %v589
        %v592 = vrot.slane %v575, 5
        %v593 = vsel %vm471, %v592, %v591
        %v594 = vrot.slane %v576, 4
        %v595 = vsel %vm474, %v594, %v593
        %v596 = vrot.slane %v577, 3
        %v597 = vsel %vm477, %v596, %v595
        %v598 = vrot.slane %v578, 2
        %v599 = vsel %vm480, %v598, %v597
        %v600 = vrot.slane %v579, 1
        %v601 = vsel %vm483, %v600, %v599
        %603 = vst.msk [vmem:[#allocation2] sm:$0xff] %vm343, %v601
        %v604 = vld [vmem:[%s255] sm:$0xff]
        %v605 = vld [vmem:[#allocation2] sm:$0xff]
        %v607 = vsel %vm343, %v605, 0
        %609 = vmatprep.subr.mxu0 0.0
        %610 = vmatpush1.msra.mxu0 0.0
        %611 = vmatprep.subr.mxu0 0.0
        %612 = vmatpush1.msra.mxu0 0.0
        %613 = vmatprep.subr.mxu0 0.0
        %614 = vmatpush1.msra.mxu0 0.0
        %615 = vmatprep.subr.mxu0 0.0
        %616 = vmatpush1.msra.mxu0 0.0
        %617 = vmatprep.subr.mxu0 0.0
        %618 = vmatpush1.msra.mxu0 0.0
        %619 = vmatprep.subr.mxu0 0.0
        %620 = vmatpush1.msra.mxu0 0.0
        %621 = vmatprep.subr.mxu0 0.0
        %622 = vmatpush1.msra.mxu0 0.0
        %623 = vmatprep.subr.mxu0 0.0
        %624 = vmatpush1.msra.mxu0 0.0
        %625 = vmatprep.subr.mxu0 0.0
        %626 = vmatpush1.msra.mxu0 0.0
        %627 = vmatprep.subr.mxu0 0.0
        %628 = vmatpush1.msra.mxu0 0.0
        %629 = vmatprep.subr.mxu0 0.0
        %630 = vmatpush1.msra.mxu0 0.0
        %631 = vmatprep.subr.mxu0 0.0
        %632 = vmatpush1.msra.mxu0 0.0
        %633 = vmatprep.subr.mxu0 0.0
        %634 = vmatpush1.msra.mxu0 0.0
        %635 = vmatprep.subr.mxu0 0.0
        %636 = vmatpush1.msra.mxu0 0.0
        %637 = vmatprep.subr.mxu0 0.0
        %638 = vmatpush1.msra.mxu0 0.0
        %639 = vmatprep.subr.mxu0 0.0
        %640 = vmatpush1.msra.mxu0 %v604
        %641 = vmatprep.subr.mxu0 0.0
        %642 = vmatpush2.msra.mxu0 0.0
        %643 = vmatprep.subr.mxu0 0.0
        %644 = vmatpush2.msra.mxu0 0.0
        %645 = vmatprep.subr.mxu0 0.0
        %646 = vmatpush2.msra.mxu0 0.0
        %647 = vmatprep.subr.mxu0 0.0
        %648 = vmatpush2.msra.mxu0 0.0
        %649 = vmatprep.subr.mxu0 0.0
        %650 = vmatpush2.msra.mxu0 0.0
        %651 = vmatprep.subr.mxu0 0.0
        %652 = vmatpush2.msra.mxu0 0.0
        %653 = vmatprep.subr.mxu0 0.0
        %654 = vmatpush2.msra.mxu0 0.0
        %655 = vmatprep.subr.mxu0 0.0
        %656 = vmatpush2.msra.mxu0 0.0
        %657 = vmatprep.subr.mxu0 0.0
        %658 = vmatpush2.msra.mxu0 0.0
        %659 = vmatprep.subr.mxu0 0.0
        %660 = vmatpush2.msra.mxu0 0.0
        %661 = vmatprep.subr.mxu0 0.0
        %662 = vmatpush2.msra.mxu0 0.0
        %663 = vmatprep.subr.mxu0 0.0
        %664 = vmatpush2.msra.mxu0 0.0
        %665 = vmatprep.subr.mxu0 0.0
        %666 = vmatpush2.msra.mxu0 0.0
        %667 = vmatprep.subr.mxu0 0.0
        %668 = vmatpush2.msra.mxu0 0.0
        %669 = vmatprep.subr.mxu0 0.0
        %670 = vmatpush2.msra.mxu0 0.0
        %671 = vmatprep.subr.mxu0 0.0
        %672 = vmatpush2.msra.mxu0 0.0
        %673 = vmatprep.mubr.f32.mxu0 0.0
        %674 = vmatmul.mubr.f32.gmra.mxu0 %v607
        %v675 = vpop.f32.mrf.mxu0
        %v676 = vadd.f32 0.0, %v675
        %v677 = vpop.f32.mrf.mxu0
        %678 = vdwg.mxu0
        %679 = vst [vmem:[%s246] sm:$0xff] %v676
        %s680 = sand.u32 %s144, 1
        %s681 = scalar_lea.sflag [#allocation4], %s680
        %s682 = sand.u32 %s144, 1
        %s683 = smul.addr %s682, 8
        %s684 = scalar_lea.vmem [#allocation3], %s683
        // Predicated region
        $region37: #{tpu_custom_call.1} parent=35 // pred_check
          %p685 = pneg %p154
        $region38: #{tpu_custom_call.1} parent=35 // pred_check_branch
          %687 = sbr.rel (%p685) target = $region40
        $region39: #{tpu_custom_call.1} parent=35 // pred_region
          %s689 = ssub.s32 128, 128
          %690 = vsyncadd %s681, %s689
          %s691 = sadd.s32 %s22, %s23
          %s692 = smul.addr %s691, 128
          %s693 = scalar_lea.hbm %s4, %s692
          %s695 = sshll.u32 %s684, 4
          %s696 = int_to_ptr.vmem [resolvable:$true] %s695
          %698 = dma.vmem_to_hbm [thread:$0]  %s696, 128, %s693, %s681
        $region40: #{tpu_custom_call.1} parent=35 // pred_fallthru
          _
      $region36: #{tpu_custom_call.1} parent=5 // pred_fallthru
        _
      %p699 = scmp.le.s32.totalorder 2, %s13
      // Predicated region
      $region41: #{tpu_custom_call.1} parent=5 // pred_check
        %p700 = pneg %p699
      $region42: #{tpu_custom_call.1} parent=5 // pred_check_branch
        %702 = sbr.rel (%p700) target = $region44
      $region43: #{tpu_custom_call.1} parent=5 // pred_region
        %s703 = ssub.s32 %s13, 2
        // Predicated region
        $region45: #{tpu_custom_call.1} parent=43 // pred_check
          %p704 = pneg %p160
        $region46: #{tpu_custom_call.1} parent=43 // pred_check_branch
          %706 = sbr.rel (%p704) target = $region48
        $region47: #{tpu_custom_call.1} parent=43 // pred_region
          %s707 = sand.u32 %s145, 1
          %s708 = scalar_lea.sflag [#allocation4], %s707
          %s709 = sand.u32 %s145, 1
          %s710 = smul.addr %s709, 8
          %s711 = scalar_lea.vmem [#allocation3], %s710
          %712 = dma.done %s708, 128
        $region48: #{tpu_custom_call.1} parent=43 // pred_fallthru
          _
      $region44: #{tpu_custom_call.1} parent=5 // pred_fallthru
        _
    $region6: #{tpu_custom_call.1} parent=1 // loop_footer
      %s17 = sadd.s32 1, %s13
    $region7: #{tpu_custom_call.1} parent=1 // loop_footer_branch
      %12 = sbr.rel target = $region3
    $region8: #{tpu_custom_call.1} parent=1 // loop_exit
      _
    %713 = vsyncpa [#allocation4], 1
    %s714 = scalar_lea.sflag [#allocation4], 1
    %715 = vsyncpa %s714, 1

</llo_original>
